<compile_context>
chip_gen: v7x
topology: tpu7x:2x2x1
jax: 0.10.0
libtpu: 0.0.40
codegen_flags: <defaults>
</compile_context>

<pallas_src>
import jax
import jax.numpy as jnp
from jax.experimental import pallas as pl
from jax.experimental.pallas import tpu as pltpu

# ---- small shapes consistent with the ViT context this layer sits in --------
B = 2      # batch
N = 8      # sequence length (tokens, position 0 = CLS token)
DIM = 32   # embedding dim


def view_cls_kernel(x_ref, o_ref):
    # x_ref: (B, N, D) resident in VMEM for the single invocation.
    # CLS pooling = take sequence position 0 for every batch row.
    o_ref[...] = x_ref[:, 0, :]


def view_mean_kernel(x_ref, o_ref):
    # Mean over the sequence (sublane) axis; accumulate in f32, scale by the
    # compile-time constant 1/N, cast back to the output dtype.
    x = x_ref[...].astype(jnp.float32)
    inv_n = jnp.float32(1.0 / x_ref.shape[1])
    o_ref[...] = (jnp.sum(x, axis=1) * inv_n).astype(o_ref.dtype)


def view_layer(x, pool="cls"):
    B_, N_, D_ = x.shape
    kernel = view_mean_kernel if pool == "mean" else view_cls_kernel
    return pl.pallas_call(
        kernel,
        out_shape=jax.ShapeDtypeStruct((B_, D_), x.dtype),
        grid_spec=pltpu.PrefetchScalarGridSpec(
            num_scalar_prefetch=0,
            grid=(1,),  # one invocation: whole batch in a single VMEM block
            in_specs=[pl.BlockSpec((B_, N_, D_), lambda i: (0, 0, 0))],
            out_specs=pl.BlockSpec((B_, D_), lambda i: (0, 0)),
        ),
        compiler_params=pltpu.CompilerParams(
            dimension_semantics=("arbitrary",),
        ),
    )(x)


if __name__ == "__main__":
    key = jax.random.PRNGKey(0)
    x = jax.random.normal(key, (B, N, DIM), dtype=jnp.float32)

    # default module behavior (pool='cls')
    y_cls = jax.block_until_ready(view_layer(x, pool="cls"))
    # also exercise the 'mean' branch
    y_mean = jax.block_until_ready(view_layer(x, pool="mean"))

    assert y_cls.shape == (B, DIM) and y_mean.shape == (B, DIM)
    assert jnp.allclose(y_cls, x[:, 0], atol=1e-6, rtol=1e-6), "cls-pool mismatch"
    assert jnp.allclose(y_mean, jnp.mean(x, axis=1), atol=1e-5, rtol=1e-5), "mean-pool mismatch"

    print("KERNEL_OK")
</pallas_src>

<mosaic_0001>
module attributes {stable_mosaic.version = 11 : i64} {
  func.func @view_cls_kernel(%arg0: i32, %arg1: memref<2x8x32xf32, #tpu.memory_space<vmem>>, %arg2: memref<2x32xf32, #tpu.memory_space<vmem>>) attributes {dimension_semantics = [#tpu.dimension_semantics<arbitrary>], iteration_bounds = array<i64: 1>, scalar_prefetch = 0 : i64, scratch_operands = 0 : i64, tpu.core_type = #tpu.core_type<tc>, window_params = [{pipeline_mode = #tpu.pipeline_mode<synchronous>, transform_indices = @transform_0, window_bounds = array<i64: 2, 8, 32>}, {pipeline_mode = #tpu.pipeline_mode<synchronous>, transform_indices = @transform_1, window_bounds = array<i64: 2, 32>}]} {
    %c0 = arith.constant 0 : index
    %c0_0 = arith.constant 0 : index
    %c0_1 = arith.constant 0 : index
    %0 = vector.load %arg1[%c0, %c0_0, %c0_1] : memref<2x8x32xf32, #tpu.memory_space<vmem>>, vector<2x1x32xf32>
    %1 = vector.shape_cast %0 : vector<2x1x32xf32> to vector<2x32xf32>
    %c0_2 = arith.constant 0 : index
    %c0_3 = arith.constant 0 : index
    %2 = vector.load %arg2[%c0_2, %c0_3] : memref<2x32xf32, #tpu.memory_space<vmem>>, vector<2x32xf32>
    tpu.vector_store %arg2[%c0_2, %c0_3], %1 {strides = array<i32>} : memref<2x32xf32, #tpu.memory_space<vmem>>, vector<2x32xf32>,
    return
  }
  func.func @transform_0(%arg0: i32) -> (i32, i32, i32) {
    %c0_i32 = arith.constant 0 : i32
    %c0_i32_0 = arith.constant 0 : i32
    %c0_i32_1 = arith.constant 0 : i32
    %c0_i32_2 = arith.constant 0 : i32
    return %c0_i32, %c0_i32_0, %c0_i32_1 : i32, i32, i32
  }
  func.func @transform_1(%arg0: i32) -> (i32, i32) {
    %c0_i32 = arith.constant 0 : i32
    %c0_i32_0 = arith.constant 0 : i32
    %c0_i32_1 = arith.constant 0 : i32
    return %c0_i32, %c0_i32_0 : i32, i32
  }
}

</mosaic_0001>

<llo_original>
// kernel: tpu_custom_call.1
$region0: #{tpu_custom_call.1}
  #allocation0 [shape = 'u32[]', space=smem, size = 0x4, offset = 0x4, fixed_abs, tag = 'smem constant byte address 0x4 - core index']
  #allocation1 [shape = 'u32[144,128]{1,0:T(1,128)}', space=vmem, size = 0x12000, scoped, tag = 'internal scratch']
  %s0 = inlined_call_operand.hbm [shape: f32[2,8,32], index: 0, kind: input, shape index: {}]
  %s1 = inlined_call_operand.hbm [shape: f32[2,32], index: 1, kind: output, shape index: {}]
  %s2 = sld [smem:[#allocation0]]
  $region18: #{tpu_custom_call.1} parent=0
    _
  %s4 = ssub.s32 1, %s2
  %s5 = scalar_select 0, %s4, %s2
  $region1: #{tpu_custom_call.1} parent=0
    #allocation2 [shape = 'u8[8192]{0}', space=vmem, size = 0x2000, scoped, tag = 'input window, operand 0, single buffered']
    #allocation3 [shape = 's32[1]{0}', space=sflag, size = 0x4, scoped, tag = 'scoped memory for tpu_custom_call.1']
    #allocation4 [shape = 's32[1]{0}', space=sflag, size = 0x4, scoped, tag = 'scoped memory for tpu_custom_call.1']
    #allocation5 [shape = 'u8[1024]{0}', space=vmem, size = 0x400, scoped, tag = 'output window, operand 0, single buffered']
    %6 = vsyncpa [#allocation3], 0
    %7 = vsyncpa [#allocation4], 0
    // Predicated region
    $region2: #{tpu_custom_call.1} parent=1 // pred_check
      _
    $region3: #{tpu_custom_call.1} parent=1 // pred_check_branch
      %9 = sbr.rel (0) target = $region5
    $region4: #{tpu_custom_call.1} parent=1 // pred_region
      %s11 = ssub.s32 256, 256
      %12 = vsyncadd [#allocation3], %s11
      %s13 = sshll.u32 [#allocation2], 4
      %s14 = int_to_ptr.vmem [resolvable:$true] %s13
      %19 = dma.hbm_to_vmem [thread:$0]  %s0, 256, %s14, [#allocation3], 128, 128, 8
    $region5: #{tpu_custom_call.1} parent=1 // pred_fallthru
      _
    // Predicated region
    $region6: #{tpu_custom_call.1} parent=1 // pred_check
      _
    $region7: #{tpu_custom_call.1} parent=1 // pred_check_branch
      %21 = sbr.rel (0) target = $region9
    $region8: #{tpu_custom_call.1} parent=1 // pred_region
      %22 = dma.done [#allocation3], 256
    $region9: #{tpu_custom_call.1} parent=1 // pred_fallthru
      _
    %v23 = vld [vmem:[#allocation2] sm:$0x1]
    %v24 = vld [vmem:[#allocation2 + $0x8] sm:$0x1]
    %v27 = vrot.slane %v24, 7
    %vm28 = vcmask 1041409
    %v29 = vsel %vm28, %v27, %v23
    %vm31 = vcmask 254976
    %32 = vst.msk [vmem:[#allocation5] sm:$0x3] %vm31, %v29
    // Predicated region
    $region10: #{tpu_custom_call.1} parent=1 // pred_check
      _
    $region11: #{tpu_custom_call.1} parent=1 // pred_check_branch
      %34 = sbr.rel (0) target = $region13
    $region12: #{tpu_custom_call.1} parent=1 // pred_region
      %s36 = ssub.s32 32, 32
      %37 = vsyncadd [#allocation4], %s36
      %s39 = sshll.u32 [#allocation5], 4
      %s40 = int_to_ptr.vmem [resolvable:$true] %s39
      %42 = dma.vmem_to_hbm [thread:$0]  %s40, 32, %s1, [#allocation4]
    $region13: #{tpu_custom_call.1} parent=1 // pred_fallthru
      _
    // Predicated region
    $region14: #{tpu_custom_call.1} parent=1 // pred_check
      _
    $region15: #{tpu_custom_call.1} parent=1 // pred_check_branch
      %44 = sbr.rel (0) target = $region17
    $region16: #{tpu_custom_call.1} parent=1 // pred_region
      %45 = dma.done [#allocation4], 32
    $region17: #{tpu_custom_call.1} parent=1 // pred_fallthru
      _
    %46 = vsyncpa [#allocation3], 1
    %47 = vsyncpa [#allocation4], 1

</llo_original>
